<compile_context>
chip_gen: v7x
topology: tpu7x:2x2x1
jax: 0.10.0
libtpu: 0.0.40
codegen_flags: <defaults>
</compile_context>

<pallas_src>
import jax
import jax.numpy as jnp
from jax.experimental import pallas as pl
from jax.experimental.pallas import tpu as pltpu

LANE = 128


# ------------------------------- helpers ----------------------------------- #

def _round_up(x, m=LANE):
    return ((x + m - 1) // m) * m


def _pad2d(x, rows, cols):
    r, c = x.shape
    return jnp.pad(x, ((0, rows - r), (0, cols - c)))


def _full_spec(shape):
    # Full-array block: last two dims equal the array dims, so the (8, 128)
    # divisibility rule does not apply.
    zeros = (0,) * len(shape)
    return pl.BlockSpec(shape, lambda i: zeros)


# ----------------------------- Pallas kernel -------------------------------- #

def _make_fused_gcn_kernel(n_layers):
    """Whole GCN forward (all layers) in one kernel body (grid=(1,))."""

    def kernel(*refs):
        a_ref, x_ref = refs[0], refs[1]
        o_ref = refs[-1]
        p_refs = refs[2:-1]

        # --- normalize adjacency once, in VMEM (never materialized in HBM) ---
        a = a_ref[...].astype(jnp.float32)                  # 0/1, exact in bf16
        deg_dst = jnp.sum(a, axis=1, keepdims=True)         # in-degree  (rows)
        deg_src = jnp.sum(a, axis=0, keepdims=True)         # out-degree (cols)
        dd = jax.lax.rsqrt(jnp.maximum(deg_dst, 1.0))
        ds = jax.lax.rsqrt(jnp.maximum(deg_src, 1.0))
        a_bf = (a * dd * ds).astype(jnp.bfloat16)           # MXU operand

        h = x_ref[...].astype(jnp.float32)
        inv_n = 1.0 / h.shape[0]

        idx = 0
        for i in range(n_layers):
            w = p_refs[idx][...].astype(jnp.bfloat16)
            idx += 1
            # GraphConv: (h @ W) then normalized aggregation, f32 accumulation.
            hw = jnp.dot(h.astype(jnp.bfloat16), w,
                         preferred_element_type=jnp.float32)
            agg = jnp.dot(a_bf, hw.astype(jnp.bfloat16),
                          preferred_element_type=jnp.float32)
            if i < n_layers - 1:
                gamma = p_refs[idx][...]
                beta = p_refs[idx + 1][...]
                idx += 2
                # One-pass training-mode BatchNorm1d stats (biased variance).
                s1 = jnp.sum(agg, axis=0, keepdims=True)
                s2 = jnp.sum(agg * agg, axis=0, keepdims=True)
                mean = s1 * inv_n
                var = jnp.maximum(s2 * inv_n - mean * mean, 0.0)
                xhat = (agg - mean) * jax.lax.rsqrt(var + 1e-5)
                h = jnp.maximum(xhat * gamma + beta, 0.0)    # BN + ReLU
                # dropout p=0.0 -> identity
            else:
                bias = p_refs[idx][...]
                idx += 1
                h = agg + bias
        o_ref[...] = h

    return kernel


# ------------------------------ glue / wrapper ------------------------------ #

def init_gcn_params(key, in_feats, n_hidden, n_classes, n_layers):
    params = []
    for i in range(n_layers):
        f_in = n_hidden if i > 0 else in_feats
        f_out = n_hidden if i < n_layers - 1 else n_classes
        key, wk = jax.random.split(key)
        bound = (6.0 / (f_in + f_out)) ** 0.5  # xavier_uniform (GraphConv reset_parameters)
        w = jax.random.uniform(wk, (f_in, f_out), jnp.float32, -bound, bound)
        layer = {"W": w}
        if i < n_layers - 1:
            layer["gamma"] = jnp.ones((1, f_out), jnp.float32)   # BatchNorm1d weight init
            layer["beta"] = jnp.zeros((1, f_out), jnp.float32)   # BatchNorm1d bias init
        else:
            layer["bias"] = jnp.zeros((1, f_out), jnp.float32)   # GraphConv bias init (zeros)
        params.append(layer)
    return params


def gcn_forward(adj, feat, params):
    n = adj.shape[0]
    n_layers = len(params)
    n_classes = params[-1]["W"].shape[1]

    # Lane-dense padding: pad every feature dim up to a multiple of 128.
    f_in_p = _round_up(feat.shape[1])
    feat_p = _pad2d(feat.astype(jnp.float32), n, f_in_p)

    inputs = [adj.astype(jnp.bfloat16), feat_p]           # A in bf16 (0/1 exact)
    in_specs = [_full_spec((n, n)), _full_spec((n, f_in_p))]

    flops = 0
    cur_in_p = f_in_p
    for i, p in enumerate(params):
        f_out = p["W"].shape[1]
        f_out_p = _round_up(f_out)
        inputs.append(_pad2d(p["W"].astype(jnp.float32), cur_in_p, f_out_p))
        in_specs.append(_full_spec((cur_in_p, f_out_p)))
        if i < n_layers - 1:
            for name in ("gamma", "beta"):
                inputs.append(_pad2d(p[name].astype(jnp.float32), 1, f_out_p))
                in_specs.append(_full_spec((1, f_out_p)))
        else:
            inputs.append(_pad2d(p["bias"].astype(jnp.float32), 1, f_out_p))
            in_specs.append(_full_spec((1, f_out_p)))
        flops += 2 * n * cur_in_p * f_out_p + 2 * n * n * f_out_p
        cur_in_p = f_out_p

    out_p = cur_in_p
    bytes_accessed = sum(int(x.size * x.dtype.itemsize) for x in inputs) + n * out_p * 4
    transcendentals = 2 * n + (n_layers - 1) * out_p      # degree + BN rsqrt (approx)

    out_full = pl.pallas_call(
        _make_fused_gcn_kernel(n_layers),
        out_shape=jax.ShapeDtypeStruct((n, out_p), jnp.float32),
        grid=(1,),
        in_specs=in_specs,
        out_specs=_full_spec((n, out_p)),
        compiler_params=pltpu.CompilerParams(
            dimension_semantics=("arbitrary",),
            vmem_limit_bytes=32 * 1024 * 1024,
        ),
        cost_estimate=pl.CostEstimate(
            flops=flops,
            transcendentals=transcendentals,
            bytes_accessed=bytes_accessed,
        ),
    )(*inputs)
    return out_full[:, :n_classes]


def gcn_forward_ref(adj, feat, params):
    """Pure-JAX reference with matching numerics (bf16 MXU inputs, f32 math)."""
    a = adj.astype(jnp.float32)
    dd = jax.lax.rsqrt(jnp.maximum(jnp.sum(a, axis=1, keepdims=True), 1.0))
    ds = jax.lax.rsqrt(jnp.maximum(jnp.sum(a, axis=0, keepdims=True), 1.0))
    a_bf = (a * dd * ds).astype(jnp.bfloat16)
    h = feat.astype(jnp.float32)
    n = h.shape[0]
    n_layers = len(params)
    for i, p in enumerate(params):
        hw = jnp.dot(h.astype(jnp.bfloat16), p["W"].astype(jnp.bfloat16),
                     preferred_element_type=jnp.float32)
        agg = jnp.dot(a_bf, hw.astype(jnp.bfloat16),
                      preferred_element_type=jnp.float32)
        if i < n_layers - 1:
            mean = jnp.sum(agg, axis=0, keepdims=True) / n
            var = jnp.maximum(jnp.sum(agg * agg, axis=0, keepdims=True) / n - mean * mean, 0.0)
            h = jnp.maximum((agg - mean) * jax.lax.rsqrt(var + 1e-5) * p["gamma"] + p["beta"], 0.0)
        else:
            h = agg + p["bias"]
    return h


# ----------------------------------- main ----------------------------------- #

if __name__ == "__main__":
    N_NODES = 64
    IN_FEATS = 32
    N_HIDDEN = 32
    N_CLASSES = 16
    N_LAYERS = 3

    key = jax.random.PRNGKey(0)
    k_adj, k_feat, k_par = jax.random.split(key, 3)

    # Random directed graph with self-loops, dense adjacency [dst, src].
    adj = (jax.random.uniform(k_adj, (N_NODES, N_NODES)) < 0.15).astype(jnp.float32)
    adj = jnp.maximum(adj, jnp.eye(N_NODES, dtype=jnp.float32))

    feat = jax.random.normal(k_feat, (N_NODES, IN_FEATS), jnp.float32)
    params = init_gcn_params(k_par, IN_FEATS, N_HIDDEN, N_CLASSES, N_LAYERS)

    out = gcn_forward(adj, feat, params)
    out = jax.block_until_ready(out)

    ref = gcn_forward_ref(adj, feat, params)
    assert out.shape == (N_NODES, N_CLASSES)
    assert bool(jnp.allclose(out, ref, atol=1e-2, rtol=1e-2)), "mismatch vs reference"

    print("KERNEL_OK")
</pallas_src>

<mosaic_0001>
module attributes {stable_mosaic.version = 11 : i64} {
  func.func @kernel(%arg0: i32, %arg1: memref<64x64xbf16, #tpu.memory_space<vmem>>, %arg2: memref<64x128xf32, #tpu.memory_space<vmem>>, %arg3: memref<128x128xf32, #tpu.memory_space<vmem>>, %arg4: memref<1x128xf32, #tpu.memory_space<vmem>>, %arg5: memref<1x128xf32, #tpu.memory_space<vmem>>, %arg6: memref<128x128xf32, #tpu.memory_space<vmem>>, %arg7: memref<1x128xf32, #tpu.memory_space<vmem>>, %arg8: memref<1x128xf32, #tpu.memory_space<vmem>>, %arg9: memref<128x128xf32, #tpu.memory_space<vmem>>, %arg10: memref<1x128xf32, #tpu.memory_space<vmem>>, %arg11: memref<64x128xf32, #tpu.memory_space<vmem>>) attributes {dimension_semantics = [#tpu.dimension_semantics<arbitrary>], iteration_bounds = array<i64: 1>, scalar_prefetch = 0 : i64, scratch_operands = 0 : i64, tpu.core_type = #tpu.core_type<tc>, window_params = [{pipeline_mode = #tpu.pipeline_mode<synchronous>, transform_indices = @transform_0, window_bounds = array<i64: 64, 64>}, {pipeline_mode = #tpu.pipeline_mode<synchronous>, transform_indices = @transform_1, window_bounds = array<i64: 64, 128>}, {pipeline_mode = #tpu.pipeline_mode<synchronous>, transform_indices = @transform_2, window_bounds = array<i64: 128, 128>}, {pipeline_mode = #tpu.pipeline_mode<synchronous>, transform_indices = @transform_3, window_bounds = array<i64: 1, 128>}, {pipeline_mode = #tpu.pipeline_mode<synchronous>, transform_indices = @transform_4, window_bounds = array<i64: 1, 128>}, {pipeline_mode = #tpu.pipeline_mode<synchronous>, transform_indices = @transform_5, window_bounds = array<i64: 128, 128>}, {pipeline_mode = #tpu.pipeline_mode<synchronous>, transform_indices = @transform_6, window_bounds = array<i64: 1, 128>}, {pipeline_mode = #tpu.pipeline_mode<synchronous>, transform_indices = @transform_7, window_bounds = array<i64: 1, 128>}, {pipeline_mode = #tpu.pipeline_mode<synchronous>, transform_indices = @transform_8, window_bounds = array<i64: 128, 128>}, {pipeline_mode = #tpu.pipeline_mode<synchronous>, transform_indices = @transform_9, window_bounds = array<i64: 1, 128>}, {pipeline_mode = #tpu.pipeline_mode<synchronous>, transform_indices = @transform_10, window_bounds = array<i64: 64, 128>}]} {
    %c0 = arith.constant 0 : index
    %c0_0 = arith.constant 0 : index
    %0 = vector.load %arg1[%c0, %c0_0] : memref<64x64xbf16, #tpu.memory_space<vmem>>, vector<64x64xbf16>
    %1 = arith.extf %0 : vector<64x64xbf16> to vector<64x64xf32>
    %cst = arith.constant dense<0.000000e+00> : vector<64xf32>
    %2 = vector.multi_reduction <add>, %1, %cst [1] : vector<64x64xf32> to vector<64xf32>
    %3 = vector.shape_cast %2 : vector<64xf32> to vector<64x1xf32>
    %cst_1 = arith.constant dense<0.000000e+00> : vector<64xf32>
    %4 = vector.multi_reduction <add>, %1, %cst_1 [0] : vector<64x64xf32> to vector<64xf32>
    %5 = vector.shape_cast %4 : vector<64xf32> to vector<1x64xf32>
    %cst_2 = arith.constant 1.000000e+00 : f32
    %6 = vector.broadcast %cst_2 : f32 to vector<64x1xf32>
    %7 = arith.maximumf %3, %6 : vector<64x1xf32>
    %8 = math.rsqrt %7 : vector<64x1xf32>
    %cst_3 = arith.constant 1.000000e+00 : f32
    %9 = vector.broadcast %cst_3 : f32 to vector<1x64xf32>
    %10 = arith.maximumf %5, %9 : vector<1x64xf32>
    %11 = math.rsqrt %10 : vector<1x64xf32>
    %12 = vector.broadcast %8 : vector<64x1xf32> to vector<64x64xf32>
    %13 = arith.mulf %1, %12 : vector<64x64xf32>
    %14 = vector.broadcast %11 : vector<1x64xf32> to vector<64x64xf32>
    %15 = arith.mulf %13, %14 : vector<64x64xf32>
    %16 = arith.truncf %15 : vector<64x64xf32> to vector<64x64xbf16>
    %c0_4 = arith.constant 0 : index
    %c0_5 = arith.constant 0 : index
    %17 = vector.load %arg2[%c0_4, %c0_5] : memref<64x128xf32, #tpu.memory_space<vmem>>, vector<64x128xf32>
    %c0_6 = arith.constant 0 : index
    %c0_7 = arith.constant 0 : index
    %18 = vector.load %arg3[%c0_6, %c0_7] : memref<128x128xf32, #tpu.memory_space<vmem>>, vector<128x128xf32>
    %19 = arith.truncf %18 : vector<128x128xf32> to vector<128x128xbf16>
    %20 = arith.truncf %17 : vector<64x128xf32> to vector<64x128xbf16>
    %cst_8 = arith.constant dense<0.000000e+00> : vector<64x128xf32>
    %21 = tpu.matmul %20, %19, %cst_8 {dimension_numbers = #tpu.dot_dimension_numbers<[1], [0], [0], [1], [0, 0, 1, 1], [], []>} : vector<64x128xbf16>, vector<128x128xbf16>, vector<64x128xf32> -> vector<64x128xf32>
    %22 = arith.truncf %21 : vector<64x128xf32> to vector<64x128xbf16>
    %cst_9 = arith.constant dense<0.000000e+00> : vector<64x128xf32>
    %23 = tpu.matmul %16, %22, %cst_9 {dimension_numbers = #tpu.dot_dimension_numbers<[1], [0], [0], [1], [0, 0, 1, 1], [], []>} : vector<64x64xbf16>, vector<64x128xbf16>, vector<64x128xf32> -> vector<64x128xf32>
    %c0_10 = arith.constant 0 : index
    %c0_11 = arith.constant 0 : index
    %24 = vector.load %arg4[%c0_10, %c0_11] : memref<1x128xf32, #tpu.memory_space<vmem>>, vector<1x128xf32>
    %c0_12 = arith.constant 0 : index
    %c0_13 = arith.constant 0 : index
    %25 = vector.load %arg5[%c0_12, %c0_13] : memref<1x128xf32, #tpu.memory_space<vmem>>, vector<1x128xf32>
    %cst_14 = arith.constant dense<0.000000e+00> : vector<128xf32>
    %26 = vector.multi_reduction <add>, %23, %cst_14 [0] : vector<64x128xf32> to vector<128xf32>
    %27 = vector.shape_cast %26 : vector<128xf32> to vector<1x128xf32>
    %28 = arith.mulf %23, %23 : vector<64x128xf32>
    %cst_15 = arith.constant dense<0.000000e+00> : vector<128xf32>
    %29 = vector.multi_reduction <add>, %28, %cst_15 [0] : vector<64x128xf32> to vector<128xf32>
    %30 = vector.shape_cast %29 : vector<128xf32> to vector<1x128xf32>
    %cst_16 = arith.constant 1.562500e-02 : f32
    %31 = vector.broadcast %cst_16 : f32 to vector<1x128xf32>
    %32 = arith.mulf %27, %31 : vector<1x128xf32>
    %cst_17 = arith.constant 1.562500e-02 : f32
    %33 = vector.broadcast %cst_17 : f32 to vector<1x128xf32>
    %34 = arith.mulf %30, %33 : vector<1x128xf32>
    %35 = arith.mulf %32, %32 : vector<1x128xf32>
    %36 = arith.subf %34, %35 : vector<1x128xf32>
    %cst_18 = arith.constant 0.000000e+00 : f32
    %37 = vector.broadcast %cst_18 : f32 to vector<1x128xf32>
    %38 = arith.maximumf %36, %37 : vector<1x128xf32>
    %39 = vector.broadcast %32 : vector<1x128xf32> to vector<64x128xf32>
    %40 = arith.subf %23, %39 : vector<64x128xf32>
    %cst_19 = arith.constant 9.99999974E-6 : f32
    %41 = vector.broadcast %cst_19 : f32 to vector<1x128xf32>
    %42 = arith.addf %38, %41 : vector<1x128xf32>
    %43 = math.rsqrt %42 : vector<1x128xf32>
    %44 = vector.broadcast %43 : vector<1x128xf32> to vector<64x128xf32>
    %45 = arith.mulf %40, %44 : vector<64x128xf32>
    %46 = vector.broadcast %24 : vector<1x128xf32> to vector<64x128xf32>
    %47 = arith.mulf %45, %46 : vector<64x128xf32>
    %48 = vector.broadcast %25 : vector<1x128xf32> to vector<64x128xf32>
    %49 = arith.addf %47, %48 : vector<64x128xf32>
    %cst_20 = arith.constant 0.000000e+00 : f32
    %50 = vector.broadcast %cst_20 : f32 to vector<64x128xf32>
    %51 = arith.maximumf %49, %50 : vector<64x128xf32>
    %c0_21 = arith.constant 0 : index
    %c0_22 = arith.constant 0 : index
    %52 = vector.load %arg6[%c0_21, %c0_22] : memref<128x128xf32, #tpu.memory_space<vmem>>, vector<128x128xf32>
    %53 = arith.truncf %52 : vector<128x128xf32> to vector<128x128xbf16>
    %54 = arith.truncf %51 : vector<64x128xf32> to vector<64x128xbf16>
    %cst_23 = arith.constant dense<0.000000e+00> : vector<64x128xf32>
    %55 = tpu.matmul %54, %53, %cst_23 {dimension_numbers = #tpu.dot_dimension_numbers<[1], [0], [0], [1], [0, 0, 1, 1], [], []>} : vector<64x128xbf16>, vector<128x128xbf16>, vector<64x128xf32> -> vector<64x128xf32>
    %56 = arith.truncf %55 : vector<64x128xf32> to vector<64x128xbf16>
    %cst_24 = arith.constant dense<0.000000e+00> : vector<64x128xf32>
    %57 = tpu.matmul %16, %56, %cst_24 {dimension_numbers = #tpu.dot_dimension_numbers<[1], [0], [0], [1], [0, 0, 1, 1], [], []>} : vector<64x64xbf16>, vector<64x128xbf16>, vector<64x128xf32> -> vector<64x128xf32>
    %c0_25 = arith.constant 0 : index
    %c0_26 = arith.constant 0 : index
    %58 = vector.load %arg7[%c0_25, %c0_26] : memref<1x128xf32, #tpu.memory_space<vmem>>, vector<1x128xf32>
    %c0_27 = arith.constant 0 : index
    %c0_28 = arith.constant 0 : index
    %59 = vector.load %arg8[%c0_27, %c0_28] : memref<1x128xf32, #tpu.memory_space<vmem>>, vector<1x128xf32>
    %cst_29 = arith.constant dense<0.000000e+00> : vector<128xf32>
    %60 = vector.multi_reduction <add>, %57, %cst_29 [0] : vector<64x128xf32> to vector<128xf32>
    %61 = vector.shape_cast %60 : vector<128xf32> to vector<1x128xf32>
    %62 = arith.mulf %57, %57 : vector<64x128xf32>
    %cst_30 = arith.constant dense<0.000000e+00> : vector<128xf32>
    %63 = vector.multi_reduction <add>, %62, %cst_30 [0] : vector<64x128xf32> to vector<128xf32>
    %64 = vector.shape_cast %63 : vector<128xf32> to vector<1x128xf32>
    %cst_31 = arith.constant 1.562500e-02 : f32
    %65 = vector.broadcast %cst_31 : f32 to vector<1x128xf32>
    %66 = arith.mulf %61, %65 : vector<1x128xf32>
    %cst_32 = arith.constant 1.562500e-02 : f32
    %67 = vector.broadcast %cst_32 : f32 to vector<1x128xf32>
    %68 = arith.mulf %64, %67 : vector<1x128xf32>
    %69 = arith.mulf %66, %66 : vector<1x128xf32>
    %70 = arith.subf %68, %69 : vector<1x128xf32>
    %cst_33 = arith.constant 0.000000e+00 : f32
    %71 = vector.broadcast %cst_33 : f32 to vector<1x128xf32>
    %72 = arith.maximumf %70, %71 : vector<1x128xf32>
    %73 = vector.broadcast %66 : vector<1x128xf32> to vector<64x128xf32>
    %74 = arith.subf %57, %73 : vector<64x128xf32>
    %cst_34 = arith.constant 9.99999974E-6 : f32
    %75 = vector.broadcast %cst_34 : f32 to vector<1x128xf32>
    %76 = arith.addf %72, %75 : vector<1x128xf32>
    %77 = math.rsqrt %76 : vector<1x128xf32>
    %78 = vector.broadcast %77 : vector<1x128xf32> to vector<64x128xf32>
    %79 = arith.mulf %74, %78 : vector<64x128xf32>
    %80 = vector.broadcast %58 : vector<1x128xf32> to vector<64x128xf32>
    %81 = arith.mulf %79, %80 : vector<64x128xf32>
    %82 = vector.broadcast %59 : vector<1x128xf32> to vector<64x128xf32>
    %83 = arith.addf %81, %82 : vector<64x128xf32>
    %cst_35 = arith.constant 0.000000e+00 : f32
    %84 = vector.broadcast %cst_35 : f32 to vector<64x128xf32>
    %85 = arith.maximumf %83, %84 : vector<64x128xf32>
    %c0_36 = arith.constant 0 : index
    %c0_37 = arith.constant 0 : index
    %86 = vector.load %arg9[%c0_36, %c0_37] : memref<128x128xf32, #tpu.memory_space<vmem>>, vector<128x128xf32>
    %87 = arith.truncf %86 : vector<128x128xf32> to vector<128x128xbf16>
    %88 = arith.truncf %85 : vector<64x128xf32> to vector<64x128xbf16>
    %cst_38 = arith.constant dense<0.000000e+00> : vector<64x128xf32>
    %89 = tpu.matmul %88, %87, %cst_38 {dimension_numbers = #tpu.dot_dimension_numbers<[1], [0], [0], [1], [0, 0, 1, 1], [], []>} : vector<64x128xbf16>, vector<128x128xbf16>, vector<64x128xf32> -> vector<64x128xf32>
    %90 = arith.truncf %89 : vector<64x128xf32> to vector<64x128xbf16>
    %cst_39 = arith.constant dense<0.000000e+00> : vector<64x128xf32>
    %91 = tpu.matmul %16, %90, %cst_39 {dimension_numbers = #tpu.dot_dimension_numbers<[1], [0], [0], [1], [0, 0, 1, 1], [], []>} : vector<64x64xbf16>, vector<64x128xbf16>, vector<64x128xf32> -> vector<64x128xf32>
    %c0_40 = arith.constant 0 : index
    %c0_41 = arith.constant 0 : index
    %92 = vector.load %arg10[%c0_40, %c0_41] : memref<1x128xf32, #tpu.memory_space<vmem>>, vector<1x128xf32>
    %93 = vector.broadcast %92 : vector<1x128xf32> to vector<64x128xf32>
    %94 = arith.addf %91, %93 : vector<64x128xf32>
    %c0_42 = arith.constant 0 : index
    %c0_43 = arith.constant 0 : index
    %95 = vector.load %arg11[%c0_42, %c0_43] : memref<64x128xf32, #tpu.memory_space<vmem>>, vector<64x128xf32>
    tpu.vector_store %arg11[%c0_42, %c0_43], %94 {strides = array<i32>} : memref<64x128xf32, #tpu.memory_space<vmem>>, vector<64x128xf32>,
    return
  }
  func.func @transform_0(%arg0: i32) -> (i32, i32) {
    %c0_i32 = arith.constant 0 : i32
    %c0_i32_0 = arith.constant 0 : i32
    %c0_i32_1 = arith.constant 0 : i32
    return %c0_i32, %c0_i32_0 : i32, i32
  }
  func.func @transform_1(%arg0: i32) -> (i32, i32) {
    %c0_i32 = arith.constant 0 : i32
    %c0_i32_0 = arith.constant 0 : i32
    %c0_i32_1 = arith.constant 0 : i32
    return %c0_i32, %c0_i32_0 : i32, i32
  }
  func.func @transform_2(%arg0: i32) -> (i32, i32) {
    %c0_i32 = arith.constant 0 : i32
    %c0_i32_0 = arith.constant 0 : i32
    %c0_i32_1 = arith.constant 0 : i32
    return %c0_i32, %c0_i32_0 : i32, i32
  }
  func.func @transform_3(%arg0: i32) -> (i32, i32) {
    %c0_i32 = arith.constant 0 : i32
    %c0_i32_0 = arith.constant 0 : i32
    %c0_i32_1 = arith.constant 0 : i32
    return %c0_i32, %c0_i32_0 : i32, i32
  }
  func.func @transform_4(%arg0: i32) -> (i32, i32) {
    %c0_i32 = arith.constant 0 : i32
    %c0_i32_0 = arith.constant 0 : i32
    %c0_i32_1 = arith.constant 0 : i32
    return %c0_i32, %c0_i32_0 : i32, i32
  }
  func.func @transform_5(%arg0: i32) -> (i32, i32) {
    %c0_i32 = arith.constant 0 : i32
    %c0_i32_0 = arith.constant 0 : i32
    %c0_i32_1 = arith.constant 0 : i32
    return %c0_i32, %c0_i32_0 : i32, i32
  }
  func.func @transform_6(%arg0: i32) -> (i32, i32) {
    %c0_i32 = arith.constant 0 : i32
    %c0_i32_0 = arith.constant 0 : i32
    %c0_i32_1 = arith.constant 0 : i32
    return %c0_i32, %c0_i32_0 : i32, i32
  }
  func.func @transform_7(%arg0: i32) -> (i32, i32) {
    %c0_i32 = arith.constant 0 : i32
    %c0_i32_0 = arith.constant 0 : i32
    %c0_i32_1 = arith.constant 0 : i32
    return %c0_i32, %c0_i32_0 : i32, i32
  }
  func.func @transform_8(%arg0: i32) -> (i32, i32) {
    %c0_i32 = arith.constant 0 : i32
    %c0_i32_0 = arith.constant 0 : i32
    %c0_i32_1 = arith.constant 0 : i32
    return %c0_i32, %c0_i32_0 : i32, i32
  }
  func.func @transform_9(%arg0: i32) -> (i32, i32) {
    %c0_i32 = arith.constant 0 : i32
    %c0_i32_0 = arith.constant 0 : i32
    %c0_i32_1 = arith.constant 0 : i32
    return %c0_i32, %c0_i32_0 : i32, i32
  }
  func.func @transform_10(%arg0: i32) -> (i32, i32) {
    %c0_i32 = arith.constant 0 : i32
    %c0_i32_0 = arith.constant 0 : i32
    %c0_i32_1 = arith.constant 0 : i32
    return %c0_i32, %c0_i32_0 : i32, i32
  }
}

</mosaic_0001>

<llo_original>
// kernel: tpu_custom_call.1
$region0: #{tpu_custom_call.1}
  #allocation0 [shape = 'u32[]', space=smem, size = 0x4, offset = 0x4, fixed_abs, tag = 'smem constant byte address 0x4 - core index']
  #allocation1 [shape = 'u32[144,128]{1,0:T(1,128)}', space=vmem, size = 0x12000, scoped, tag = 'internal scratch']
  %s0 = inlined_call_operand.hbm [shape: bf16[64,64], index: 0, kind: input, shape index: {}]
  %s1 = inlined_call_operand.hbm [shape: f32[64,128], index: 1, kind: input, shape index: {}]
  %s2 = inlined_call_operand.hbm [shape: f32[128,128], index: 2, kind: input, shape index: {}]
  %s3 = inlined_call_operand.vmem [shape: f32[1,128], index: 3, kind: input, shape index: {}]
  %s4 = inlined_call_operand.vmem [shape: f32[1,128], index: 4, kind: input, shape index: {}]
  %s5 = inlined_call_operand.hbm [shape: f32[128,128], index: 5, kind: input, shape index: {}]
  %s6 = inlined_call_operand.vmem [shape: f32[1,128], index: 6, kind: input, shape index: {}]
  %s7 = inlined_call_operand.vmem [shape: f32[1,128], index: 7, kind: input, shape index: {}]
  %s8 = inlined_call_operand.hbm [shape: f32[128,128], index: 8, kind: input, shape index: {}]
  %s9 = inlined_call_operand.vmem [shape: f32[1,128], index: 9, kind: input, shape index: {}]
  %s10 = inlined_call_operand.hbm [shape: f32[64,128], index: 10, kind: output, shape index: {}]
  %s11 = sld [smem:[#allocation0]]
  $region70: #{tpu_custom_call.1} parent=0
    _
  %s13 = ssub.s32 1, %s11
  %s14 = scalar_select 0, %s13, %s11
  $region1: #{tpu_custom_call.1} parent=0
    #allocation2 [shape = 'u8[16384]{0}', space=vmem, size = 0x4000, scoped, tag = 'input window, operand 0, single buffered']
    #allocation3 [shape = 's32[1]{0}', space=sflag, size = 0x4, scoped, tag = 'scoped memory for tpu_custom_call.1']
    #allocation4 [shape = 's32[1]{0}', space=sflag, size = 0x4, scoped, tag = 'scoped memory for tpu_custom_call.1']
    #allocation5 [shape = 'u8[32768]{0}', space=vmem, size = 0x8000, scoped, tag = 'input window, operand 1, single buffered']
    #allocation6 [shape = 's32[1]{0}', space=sflag, size = 0x4, scoped, tag = 'scoped memory for tpu_custom_call.1']
    #allocation7 [shape = 'u8[65536]{0}', space=vmem, size = 0x10000, scoped, tag = 'input window, operand 2, single buffered']
    #allocation8 [shape = 'u8[65536]{0}', space=vmem, size = 0x10000, scoped, tag = 'input window, operand 5, single buffered']
    #allocation9 [shape = 's32[1]{0}', space=sflag, size = 0x4, scoped, tag = 'scoped memory for tpu_custom_call.1']
    #allocation10 [shape = 'u8[65536]{0}', space=vmem, size = 0x10000, scoped, tag = 'input window, operand 8, single buffered']
    #allocation11 [shape = 'u8[32768]{0}', space=vmem, size = 0x8000, scoped, tag = 'output window, operand 0, single buffered']
    %15 = vsyncpa [#allocation3], 0
    %16 = vsyncpa [#allocation6], 0
    %17 = vsyncpa [#allocation9], 0
    %18 = vsyncpa [#allocation4], 0
    // Predicated region
    $region2: #{tpu_custom_call.1} parent=1 // pred_check
      _
    $region3: #{tpu_custom_call.1} parent=1 // pred_check_branch
      %20 = sbr.rel (0) target = $region5
    $region4: #{tpu_custom_call.1} parent=1 // pred_region
      %s22 = ssub.s32 512, 512
      %23 = vsyncadd [#allocation3], %s22
      %s24 = sshll.u32 [#allocation2], 4
      %s25 = int_to_ptr.vmem [resolvable:$true] %s24
      %30 = dma.hbm_to_vmem [thread:$0]  %s0, 512, %s25, [#allocation3], 64, 64, 4
    $region5: #{tpu_custom_call.1} parent=1 // pred_fallthru
      _
    // Predicated region
    $region6: #{tpu_custom_call.1} parent=1 // pred_check
      _
    $region7: #{tpu_custom_call.1} parent=1 // pred_check_branch
      %32 = sbr.rel (0) target = $region9
    $region8: #{tpu_custom_call.1} parent=1 // pred_region
      %s34 = ssub.s32 1024, 1024
      %35 = vsyncadd [#allocation6], %s34
      %s36 = sshll.u32 [#allocation5], 4
      %s37 = int_to_ptr.vmem [resolvable:$true] %s36
      %42 = dma.hbm_to_vmem [thread:$0]  %s1, 1024, %s37, [#allocation6], 128, 128, 8
    $region9: #{tpu_custom_call.1} parent=1 // pred_fallthru
      _
    // Predicated region
    $region10: #{tpu_custom_call.1} parent=1 // pred_check
      _
    $region11: #{tpu_custom_call.1} parent=1 // pred_check_branch
      %44 = sbr.rel (0) target = $region13
    $region12: #{tpu_custom_call.1} parent=1 // pred_region
      %s46 = ssub.s32 2048, 2048
      %47 = vsyncadd [#allocation6], %s46
      %s48 = sshll.u32 [#allocation7], 4
      %s49 = int_to_ptr.vmem [resolvable:$true] %s48
      %54 = dma.hbm_to_vmem [thread:$0]  %s2, 2048, %s49, [#allocation6], 128, 128, 8
    $region13: #{tpu_custom_call.1} parent=1 // pred_fallthru
      _
    // Predicated region
    $region14: #{tpu_custom_call.1} parent=1 // pred_check
      _
    $region15: #{tpu_custom_call.1} parent=1 // pred_check_branch
      %56 = sbr.rel (0) target = $region17
    $region16: #{tpu_custom_call.1} parent=1 // pred_region
      _
    $region17: #{tpu_custom_call.1} parent=1 // pred_fallthru
      _
    // Predicated region
    $region18: #{tpu_custom_call.1} parent=1 // pred_check
      _
    $region19: #{tpu_custom_call.1} parent=1 // pred_check_branch
      %58 = sbr.rel (0) target = $region21
    $region20: #{tpu_custom_call.1} parent=1 // pred_region
      _
    $region21: #{tpu_custom_call.1} parent=1 // pred_fallthru
      _
    // Predicated region
    $region22: #{tpu_custom_call.1} parent=1 // pred_check
      _
    $region23: #{tpu_custom_call.1} parent=1 // pred_check_branch
      %60 = sbr.rel (0) target = $region25
    $region24: #{tpu_custom_call.1} parent=1 // pred_region
      %s62 = ssub.s32 2048, 2048
      %63 = vsyncadd [#allocation9], %s62
      %s64 = sshll.u32 [#allocation8], 4
      %s65 = int_to_ptr.vmem [resolvable:$true] %s64
      %70 = dma.hbm_to_vmem [thread:$0]  %s5, 2048, %s65, [#allocation9], 128, 128, 8
    $region25: #{tpu_custom_call.1} parent=1 // pred_fallthru
      _
    // Predicated region
    $region26: #{tpu_custom_call.1} parent=1 // pred_check
      _
    $region27: #{tpu_custom_call.1} parent=1 // pred_check_branch
      %72 = sbr.rel (0) target = $region29
    $region28: #{tpu_custom_call.1} parent=1 // pred_region
      _
    $region29: #{tpu_custom_call.1} parent=1 // pred_fallthru
      _
    // Predicated region
    $region30: #{tpu_custom_call.1} parent=1 // pred_check
      _
    $region31: #{tpu_custom_call.1} parent=1 // pred_check_branch
      %74 = sbr.rel (0) target = $region33
    $region32: #{tpu_custom_call.1} parent=1 // pred_region
      _
    $region33: #{tpu_custom_call.1} parent=1 // pred_fallthru
      _
    // Predicated region
    $region34: #{tpu_custom_call.1} parent=1 // pred_check
      _
    $region35: #{tpu_custom_call.1} parent=1 // pred_check_branch
      %76 = sbr.rel (0) target = $region37
    $region36: #{tpu_custom_call.1} parent=1 // pred_region
      %s78 = ssub.s32 2048, 2048
      %79 = vsyncadd [#allocation9], %s78
      %s80 = sshll.u32 [#allocation10], 4
      %s81 = int_to_ptr.vmem [resolvable:$true] %s80
      %86 = dma.hbm_to_vmem [thread:$0]  %s8, 2048, %s81, [#allocation9], 128, 128, 8
    $region37: #{tpu_custom_call.1} parent=1 // pred_fallthru
      _
    // Predicated region
    $region38: #{tpu_custom_call.1} parent=1 // pred_check
      _
    $region39: #{tpu_custom_call.1} parent=1 // pred_check_branch
      %88 = sbr.rel (0) target = $region41
    $region40: #{tpu_custom_call.1} parent=1 // pred_region
      _
    $region41: #{tpu_custom_call.1} parent=1 // pred_fallthru
      _
    // Predicated region
    $region42: #{tpu_custom_call.1} parent=1 // pred_check
      _
    $region43: #{tpu_custom_call.1} parent=1 // pred_check_branch
      %90 = sbr.rel (0) target = $region45
    $region44: #{tpu_custom_call.1} parent=1 // pred_region
      %91 = dma.done [#allocation3], 512
    $region45: #{tpu_custom_call.1} parent=1 // pred_fallthru
      _
    // Predicated region
    $region46: #{tpu_custom_call.1} parent=1 // pred_check
      _
    $region47: #{tpu_custom_call.1} parent=1 // pred_check_branch
      %93 = sbr.rel (0) target = $region49
    $region48: #{tpu_custom_call.1} parent=1 // pred_region
      %94 = dma.done [#allocation6], 1024
    $region49: #{tpu_custom_call.1} parent=1 // pred_fallthru
      _
    // Predicated region
    $region50: #{tpu_custom_call.1} parent=1 // pred_check
      _
    $region51: #{tpu_custom_call.1} parent=1 // pred_check_branch
      %96 = sbr.rel (0) target = $region53
    $region52: #{tpu_custom_call.1} parent=1 // pred_region
      %97 = dma.done [#allocation6], 2048
    $region53: #{tpu_custom_call.1} parent=1 // pred_fallthru
      _
    // Predicated region
    $region54: #{tpu_custom_call.1} parent=1 // pred_check
      _
    $region55: #{tpu_custom_call.1} parent=1 // pred_check_branch
      %99 = sbr.rel (0) target = $region57
    $region56: #{tpu_custom_call.1} parent=1 // pred_region
      %100 = dma.done [#allocation9], 2048
    $region57: #{tpu_custom_call.1} parent=1 // pred_fallthru
      _
    // Predicated region
    $region58: #{tpu_custom_call.1} parent=1 // pred_check
      _
    $region59: #{tpu_custom_call.1} parent=1 // pred_check_branch
      %102 = sbr.rel (0) target = $region61
    $region60: #{tpu_custom_call.1} parent=1 // pred_region
      %103 = dma.done [#allocation9], 2048
    $region61: #{tpu_custom_call.1} parent=1 // pred_fallthru
      _
    %v105 = vld [vmem:[#allocation2] sm:$0xf]
    %v106 = vld [vmem:[#allocation2 + $0x4] sm:$0xf]
    %v107 = vld [vmem:[#allocation2 + $0x8] sm:$0xf]
    %v108 = vld [vmem:[#allocation2 + $0xc] sm:$0xf]
    %v109 = vld [vmem:[#allocation2 + $0x10] sm:$0xf]
    %v110 = vld [vmem:[#allocation2 + $0x14] sm:$0xf]
    %v111 = vld [vmem:[#allocation2 + $0x18] sm:$0xf]
    %v112 = vld [vmem:[#allocation2 + $0x1c] sm:$0xf]
    %v113 = vunpack.c.l.bf16 %v105
    %v114 = vunpack.c.l.bf16 %v106
    %v115 = vunpack.c.l.bf16 %v107
    %v116 = vunpack.c.l.bf16 %v108
    %v117 = vunpack.c.l.bf16 %v109
    %v118 = vunpack.c.l.bf16 %v110
    %v119 = vunpack.c.l.bf16 %v111
    %v120 = vunpack.c.l.bf16 %v112
    %vm121 = vcmask 523264
    %v122 = vsel %vm121, %v113, 0.0
    %123 = vadd.xlane.f32.xlu0 %v122
    %v124 = vpop.xlane.xlu0 %123
    %v125 = vsel %vm121, %v114, 0.0
    %126 = vadd.xlane.f32.xlu0 %v125
    %v127 = vpop.xlane.xlu0 %126
    %v128 = vsel %vm121, %v115, 0.0
    %129 = vadd.xlane.f32.xlu0 %v128
    %v130 = vpop.xlane.xlu0 %129
    %v131 = vsel %vm121, %v116, 0.0
    %132 = vadd.xlane.f32.xlu0 %v131
    %v133 = vpop.xlane.xlu0 %132
    %v134 = vsel %vm121, %v117, 0.0
    %135 = vadd.xlane.f32.xlu0 %v134
    %v136 = vpop.xlane.xlu0 %135
    %v137 = vsel %vm121, %v118, 0.0
    %138 = vadd.xlane.f32.xlu0 %v137
    %v139 = vpop.xlane.xlu0 %138
    %v140 = vsel %vm121, %v119, 0.0
    %141 = vadd.xlane.f32.xlu0 %v140
    %v142 = vpop.xlane.xlu0 %141
    %v143 = vsel %vm121, %v120, 0.0
    %144 = vadd.xlane.f32.xlu0 %v143
    %v145 = vpop.xlane.xlu0 %144
    %v146 = vadd.f32 %v122, %v125
    %v147 = vadd.f32 %v146, %v128
    %v148 = vadd.f32 %v147, %v131
    %v149 = vadd.f32 %v148, %v134
    %v150 = vadd.f32 %v149, %v137
    %v151 = vadd.f32 %v150, %v140
    %v152 = vadd.f32 %v151, %v143
    %v153 = vrot.slane %v152, 4
    %v154 = vadd.f32 %v152, %v153
    %v155 = vrot.slane %v154, 2
    %v156 = vadd.f32 %v154, %v155
    %v157 = vrot.slane %v156, 1
    %v158 = vadd.f32 %v156, %v157
    %v159 = vmax.f32 %v124, 1.0
    %v160 = vmax.f32 %v127, 1.0
    %v161 = vmax.f32 %v130, 1.0
    %v162 = vmax.f32 %v133, 1.0
    %v163 = vmax.f32 %v136, 1.0
    %v164 = vmax.f32 %v139, 1.0
    %v165 = vmax.f32 %v142, 1.0
    %v166 = vmax.f32 %v145, 1.0
    %v167 = vrsqrt.pop %v159
    %v168 = vrsqrt.pop %v160
    %v169 = vrsqrt.pop %v161
    %v170 = vrsqrt.pop %v162
    %v171 = vrsqrt.pop %v163
    %v172 = vrsqrt.pop %v164
    %v173 = vrsqrt.pop %v165
    %v174 = vrsqrt.pop %v166
    %v175 = vmax.f32 %v158, 1.0
    %v176 = vrsqrt.pop %v175
    %v177 = vmul.f32 %v113, %v167
    %v178 = vmul.f32 %v114, %v168
    %v179 = vmul.f32 %v115, %v169
    %v180 = vmul.f32 %v116, %v170
    %v181 = vmul.f32 %v117, %v171
    %v182 = vmul.f32 %v118, %v172
    %v183 = vmul.f32 %v119, %v173
    %v184 = vmul.f32 %v120, %v174
    %v185 = vmul.f32 %v177, %v176
    %v186 = vmul.f32 %v178, %v176
    %v187 = vmul.f32 %v179, %v176
    %v188 = vmul.f32 %v180, %v176
    %v189 = vmul.f32 %v181, %v176
    %v190 = vmul.f32 %v182, %v176
    %v191 = vmul.f32 %v183, %v176
    %v192 = vmul.f32 %v184, %v176
    %v193 = vpack.c.bf16 %v186, %v185
    %v194 = vpack.c.bf16 %v188, %v187
    %v195 = vpack.c.bf16 %v190, %v189
    %v196 = vpack.c.bf16 %v192, %v191
    %v197 = vld [vmem:[#allocation5] sm:$0xff]
    %v198 = vld [vmem:[#allocation5 + $0x8] sm:$0xff]
    %v199 = vld [vmem:[#allocation5 + $0x10] sm:$0xff]
    %v200 = vld [vmem:[#allocation5 + $0x18] sm:$0xff]
    %v201 = vld [vmem:[#allocation5 + $0x20] sm:$0xff]
    %v202 = vld [vmem:[#allocation5 + $0x28] sm:$0xff]
    %v203 = vld [vmem:[#allocation5 + $0x30] sm:$0xff]
    %v204 = vld [vmem:[#allocation5 + $0x38] sm:$0xff]
    %v205 = vld [vmem:[#allocation7] sm:$0xff]
    %v206 = vld [vmem:[#allocation7 + $0x8] sm:$0xff]
    %v207 = vld [vmem:[#allocation7 + $0x10] sm:$0xff]
    %v208 = vld [vmem:[#allocation7 + $0x18] sm:$0xff]
    %v209 = vld [vmem:[#allocation7 + $0x20] sm:$0xff]
    %v210 = vld [vmem:[#allocation7 + $0x28] sm:$0xff]
    %v211 = vld [vmem:[#allocation7 + $0x30] sm:$0xff]
    %v212 = vld [vmem:[#allocation7 + $0x38] sm:$0xff]
    %v213 = vld [vmem:[#allocation7 + $0x40] sm:$0xff]
    %v214 = vld [vmem:[#allocation7 + $0x48] sm:$0xff]
    %v215 = vld [vmem:[#allocation7 + $0x50] sm:$0xff]
    %v216 = vld [vmem:[#allocation7 + $0x58] sm:$0xff]
    %v217 = vld [vmem:[#allocation7 + $0x60] sm:$0xff]
    %v218 = vld [vmem:[#allocation7 + $0x68] sm:$0xff]
    %v219 = vld [vmem:[#allocation7 + $0x70] sm:$0xff]
    %v220 = vld [vmem:[#allocation7 + $0x78] sm:$0xff]
    %v221 = vpack.c.bf16 %v206, %v205
    %v222 = vpack.c.bf16 %v208, %v207
    %v223 = vpack.c.bf16 %v210, %v209
    %v224 = vpack.c.bf16 %v212, %v211
    %v225 = vpack.c.bf16 %v214, %v213
    %v226 = vpack.c.bf16 %v216, %v215
    %v227 = vpack.c.bf16 %v218, %v217
    %v228 = vpack.c.bf16 %v220, %v219
    %v229 = vpack.c.bf16 %v198, %v197
    %v230 = vpack.c.bf16 %v200, %v199
    %v231 = vpack.c.bf16 %v202, %v201
    %v232 = vpack.c.bf16 %v204, %v203
    %233 = vmatprep.subr.bf16.mxu0 0
    %234 = vmatpush1.bf16.msra.mxu0 %v221
    %235 = vmatprep.subr.bf16.mxu0 0
    %236 = vmatpush1.bf16.msra.mxu0 %v222
    %237 = vmatprep.subr.bf16.mxu0 0
    %238 = vmatpush1.bf16.msra.mxu0 %v223
    %239 = vmatprep.subr.bf16.mxu0 0
    %240 = vmatpush1.bf16.msra.mxu0 %v224
    %241 = vmatprep.subr.bf16.mxu0 0
    %242 = vmatpush1.bf16.msra.mxu0 %v225
    %243 = vmatprep.subr.bf16.mxu0 0
    %244 = vmatpush1.bf16.msra.mxu0 %v226
    %245 = vmatprep.subr.bf16.mxu0 0
    %246 = vmatpush1.bf16.msra.mxu0 %v227
    %247 = vmatprep.subr.bf16.mxu0 0
    %248 = vmatpush1.bf16.msra.mxu0 %v228
    %249 = vmatprep.subr.bf16.mxu0 0
    %250 = vmatpush1.bf16.msra.mxu0 0
    %251 = vmatprep.subr.bf16.mxu0 0
    %252 = vmatpush1.bf16.msra.mxu0 0
    %253 = vmatprep.subr.bf16.mxu0 0
    %254 = vmatpush1.bf16.msra.mxu0 0
    %255 = vmatprep.subr.bf16.mxu0 0
    %256 = vmatpush1.bf16.msra.mxu0 0
    %257 = vmatprep.subr.bf16.mxu0 0
    %258 = vmatpush1.bf16.msra.mxu0 0
    %259 = vmatprep.subr.bf16.mxu0 0
    %260 = vmatpush1.bf16.msra.mxu0 0
    %261 = vmatprep.subr.bf16.mxu0 0
    %262 = vmatpush1.bf16.msra.mxu0 0
    %263 = vmatprep.subr.bf16.mxu0 0
    %264 = vmatpush1.bf16.msra.mxu0 0
    %265 = vmatprep.mubr.bf16.mxu0 0
    %266 = vmatmul.mubr.bf16.gmra.mrb[0].mxu0 %v229
    %v267 = vpop.f32.mrb[0].mxu0
    %v268 = vadd.f32 0.0, %v267
    %v269 = vpop.f32.mrb[0].mxu0
    %v270 = vpop.f32.mrb[0].mxu0
    %v271 = vadd.f32 0.0, %v270
    %v272 = vpop.f32.mrb[0].mxu0
    %273 = vmatprep.mubr.bf16.mxu0 0
    %274 = vmatmul.mubr.bf16.gmra.mrb[0].mxu0 %v230
    %v275 = vpop.f32.mrb[0].mxu0
    %v276 = vadd.f32 0.0, %v275
    %v277 = vpop.f32.mrb[0].mxu0
    %v278 = vpop.f32.mrb[0].mxu0
    %v279 = vadd.f32 0.0, %v278
    %v280 = vpop.f32.mrb[0].mxu0
    %281 = vmatprep.mubr.bf16.mxu0 0
    %282 = vmatmul.mubr.bf16.gmra.mrb[0].mxu0 %v231
    %v283 = vpop.f32.mrb[0].mxu0
    %v284 = vadd.f32 0.0, %v283
    %v285 = vpop.f32.mrb[0].mxu0
    %v286 = vpop.f32.mrb[0].mxu0
    %v287 = vadd.f32 0.0, %v286
    %v288 = vpop.f32.mrb[0].mxu0
    %289 = vmatprep.mubr.bf16.mxu0 0
    %290 = vmatmul.mubr.bf16.gmra.mrb[0].mxu0 %v232
    %v291 = vpop.f32.mrb[0].mxu0
    %v292 = vadd.f32 0.0, %v291
    %v293 = vpop.f32.mrb[0].mxu0
    %v294 = vpop.f32.mrb[0].mxu0
    %v295 = vadd.f32 0.0, %v294
    %v296 = vpop.f32.mrb[0].mxu0
    %297 = vdwg.mxu0
    %v298 = vpack.c.bf16 %v271, %v268
    %v299 = vpack.c.bf16 %v279, %v276
    %v300 = vpack.c.bf16 %v287, %v284
    %v301 = vpack.c.bf16 %v295, %v292
    %v303 = vsel %vm121, %v193, 0
    %v306 = vsel %vm121, %v194, 0
    %v309 = vsel %vm121, %v195, 0
    %v312 = vsel %vm121, %v196, 0
    %314 = vmatprep.subr.bf16.mxu0 0
    %315 = vmatpush1.bf16.msra.mxu0 %v298
    %316 = vmatprep.subr.bf16.mxu0 0
    %317 = vmatpush1.bf16.msra.mxu0 %v299
    %318 = vmatprep.subr.bf16.mxu0 0
    %319 = vmatpush1.bf16.msra.mxu0 %v300
    %320 = vmatprep.subr.bf16.mxu0 0
    %321 = vmatpush1.bf16.msra.mxu0 %v301
    %322 = vmatprep.subr.bf16.mxu0 0
    %323 = vmatpush1.bf16.msra.mxu0 0
    %324 = vmatprep.subr.bf16.mxu0 0
    %325 = vmatpush1.bf16.msra.mxu0 0
    %326 = vmatprep.subr.bf16.mxu0 0
    %327 = vmatpush1.bf16.msra.mxu0 0
    %328 = vmatprep.subr.bf16.mxu0 0
    %329 = vmatpush1.bf16.msra.mxu0 0
    %330 = vmatprep.subr.bf16.mxu0 0
    %331 = vmatpush1.bf16.msra.mxu0 0
    %332 = vmatprep.subr.bf16.mxu0 0
    %333 = vmatpush1.bf16.msra.mxu0 0
    %334 = vmatprep.subr.bf16.mxu0 0
    %335 = vmatpush1.bf16.msra.mxu0 0
    %336 = vmatprep.subr.bf16.mxu0 0
    %337 = vmatpush1.bf16.msra.mxu0 0
    %338 = vmatprep.subr.bf16.mxu0 0
    %339 = vmatpush1.bf16.msra.mxu0 0
    %340 = vmatprep.subr.bf16.mxu0 0
    %341 = vmatpush1.bf16.msra.mxu0 0
    %342 = vmatprep.subr.bf16.mxu0 0
    %343 = vmatpush1.bf16.msra.mxu0 0
    %344 = vmatprep.subr.bf16.mxu0 0
    %345 = vmatpush1.bf16.msra.mxu0 0
    %346 = vmatprep.mubr.bf16.mxu0 0
    %347 = vmatmul.mubr.bf16.gmra.mrb[0].mxu0 %v303
    %v348 = vpop.f32.mrb[0].mxu0
    %v349 = vadd.f32 0.0, %v348
    %v350 = vpop.f32.mrb[0].mxu0
    %v351 = vpop.f32.mrb[0].mxu0
    %v352 = vadd.f32 0.0, %v351
    %v353 = vpop.f32.mrb[0].mxu0
    %354 = vmatprep.mubr.bf16.mxu0 0
    %355 = vmatmul.mubr.bf16.gmra.mrb[0].mxu0 %v306
    %v356 = vpop.f32.mrb[0].mxu0
    %v357 = vadd.f32 0.0, %v356
    %v358 = vpop.f32.mrb[0].mxu0
    %v359 = vpop.f32.mrb[0].mxu0
    %v360 = vadd.f32 0.0, %v359
    %v361 = vpop.f32.mrb[0].mxu0
    %362 = vmatprep.mubr.bf16.mxu0 0
    %363 = vmatmul.mubr.bf16.gmra.mrb[0].mxu0 %v309
    %v364 = vpop.f32.mrb[0].mxu0
    %v365 = vadd.f32 0.0, %v364
    %v366 = vpop.f32.mrb[0].mxu0
    %v367 = vpop.f32.mrb[0].mxu0
    %v368 = vadd.f32 0.0, %v367
    %v369 = vpop.f32.mrb[0].mxu0
    %370 = vmatprep.mubr.bf16.mxu0 0
    %371 = vmatmul.mubr.bf16.gmra.mrb[0].mxu0 %v312
    %v372 = vpop.f32.mrb[0].mxu0
    %v373 = vadd.f32 0.0, %v372
    %v374 = vpop.f32.mrb[0].mxu0
    %v375 = vpop.f32.mrb[0].mxu0
    %v376 = vadd.f32 0.0, %v375
    %v377 = vpop.f32.mrb[0].mxu0
    %378 = vdwg.mxu0
    %v379 = vld [vmem:[%s3] sm:$0x1]
    %v380 = vld [vmem:[%s4] sm:$0x1]
    %v381 = vadd.f32 %v349, %v352
    %v382 = vadd.f32 %v381, %v357
    %v383 = vadd.f32 %v382, %v360
    %v384 = vadd.f32 %v383, %v365
    %v385 = vadd.f32 %v384, %v368
    %v386 = vadd.f32 %v385, %v373
    %v387 = vadd.f32 %v386, %v376
    %v388 = vrot.slane %v387, 4
    %v389 = vadd.f32 %v387, %v388
    %v390 = vrot.slane %v389, 2
    %v391 = vadd.f32 %v389, %v390
    %v392 = vrot.slane %v391, 1
    %v393 = vadd.f32 %v391, %v392
    %v394 = vmul.f32 %v349, %v349
    %v395 = vmul.f32 %v352, %v352
    %v396 = vmul.f32 %v357, %v357
    %v397 = vmul.f32 %v360, %v360
    %v398 = vmul.f32 %v365, %v365
    %v399 = vmul.f32 %v368, %v368
    %v400 = vmul.f32 %v373, %v373
    %v401 = vmul.f32 %v376, %v376
    %v402 = vadd.f32 %v394, %v395
    %v403 = vadd.f32 %v402, %v396
    %v404 = vadd.f32 %v403, %v397
    %v405 = vadd.f32 %v404, %v398
    %v406 = vadd.f32 %v405, %v399
    %v407 = vadd.f32 %v406, %v400
    %v408 = vadd.f32 %v407, %v401
    %v409 = vrot.slane %v408, 4
    %v410 = vadd.f32 %v408, %v409
    %v411 = vrot.slane %v410, 2
    %v412 = vadd.f32 %v410, %v411
    %v413 = vrot.slane %v412, 1
    %v414 = vadd.f32 %v412, %v413
    %v415 = vmul.f32 %v393, 0.015625
    %v416 = vmul.f32 %v414, 0.015625
    %v417 = vmul.f32 %v415, %v415
    %v418 = vsub.f32 %v416, %v417
    %v419 = vmax.f32 %v418, 0.0
    %v420 = vsub.f32 %v349, %v415
    %v421 = vsub.f32 %v352, %v415
    %v422 = vsub.f32 %v357, %v415
    %v423 = vsub.f32 %v360, %v415
    %v424 = vsub.f32 %v365, %v415
    %v425 = vsub.f32 %v368, %v415
    %v426 = vsub.f32 %v373, %v415
    %v427 = vsub.f32 %v376, %v415
    %v428 = vadd.f32 %v419, 1e-05
    %v429 = vrsqrt.pop %v428
    %v430 = vmul.f32 %v420, %v429
    %v431 = vmul.f32 %v421, %v429
    %v432 = vmul.f32 %v422, %v429
    %v433 = vmul.f32 %v423, %v429
    %v434 = vmul.f32 %v424, %v429
    %v435 = vmul.f32 %v425, %v429
    %v436 = vmul.f32 %v426, %v429
    %v437 = vmul.f32 %v427, %v429
    %v439 = vlaneseq
    %v440 = vshrl.u32 %v439, 7
    %v441 = vsub.s32 0, %v440
    %v442 = vrot.slane %v379, %v441
    %v444 = vmul.f32 %v430, %v442
    %v445 = vmul.f32 %v431, %v442
    %v446 = vmul.f32 %v432, %v442
    %v447 = vmul.f32 %v433, %v442
    %v448 = vmul.f32 %v434, %v442
    %v449 = vmul.f32 %v435, %v442
    %v450 = vmul.f32 %v436, %v442
    %v451 = vmul.f32 %v437, %v442
    %v453 = vlaneseq
    %v454 = vshrl.u32 %v453, 7
    %v455 = vsub.s32 0, %v454
    %v456 = vrot.slane %v380, %v455
    %v458 = vadd.f32 %v444, %v456
    %v459 = vadd.f32 %v445, %v456
    %v460 = vadd.f32 %v446, %v456
    %v461 = vadd.f32 %v447, %v456
    %v462 = vadd.f32 %v448, %v456
    %v463 = vadd.f32 %v449, %v456
    %v464 = vadd.f32 %v450, %v456
    %v465 = vadd.f32 %v451, %v456
    %v466 = vmax.f32 %v458, 0.0
    %v467 = vmax.f32 %v459, 0.0
    %v468 = vmax.f32 %v460, 0.0
    %v469 = vmax.f32 %v461, 0.0
    %v470 = vmax.f32 %v462, 0.0
    %v471 = vmax.f32 %v463, 0.0
    %v472 = vmax.f32 %v464, 0.0
    %v473 = vmax.f32 %v465, 0.0
    %v474 = vld [vmem:[#allocation8] sm:$0xff]
    %v475 = vld [vmem:[#allocation8 + $0x8] sm:$0xff]
    %v476 = vld [vmem:[#allocation8 + $0x10] sm:$0xff]
    %v477 = vld [vmem:[#allocation8 + $0x18] sm:$0xff]
    %v478 = vld [vmem:[#allocation8 + $0x20] sm:$0xff]
    %v479 = vld [vmem:[#allocation8 + $0x28] sm:$0xff]
    %v480 = vld [vmem:[#allocation8 + $0x30] sm:$0xff]
    %v481 = vld [vmem:[#allocation8 + $0x38] sm:$0xff]
    %v482 = vld [vmem:[#allocation8 + $0x40] sm:$0xff]
    %v483 = vld [vmem:[#allocation8 + $0x48] sm:$0xff]
    %v484 = vld [vmem:[#allocation8 + $0x50] sm:$0xff]
    %v485 = vld [vmem:[#allocation8 + $0x58] sm:$0xff]
    %v486 = vld [vmem:[#allocation8 + $0x60] sm:$0xff]
    %v487 = vld [vmem:[#allocation8 + $0x68] sm:$0xff]
    %v488 = vld [vmem:[#allocation8 + $0x70] sm:$0xff]
    %v489 = vld [vmem:[#allocation8 + $0x78] sm:$0xff]
    %v490 = vpack.c.bf16 %v475, %v474
    %v491 = vpack.c.bf16 %v477, %v476
    %v492 = vpack.c.bf16 %v479, %v478
    %v493 = vpack.c.bf16 %v481, %v480
    %v494 = vpack.c.bf16 %v483, %v482
    %v495 = vpack.c.bf16 %v485, %v484
    %v496 = vpack.c.bf16 %v487, %v486
    %v497 = vpack.c.bf16 %v489, %v488
    %v498 = vpack.c.bf16 %v467, %v466
    %v499 = vpack.c.bf16 %v469, %v468
    %v500 = vpack.c.bf16 %v471, %v470
    %v501 = vpack.c.bf16 %v473, %v472
    %502 = vmatprep.subr.bf16.mxu0 0
    %503 = vmatpush1.bf16.msra.mxu0 %v490
    %504 = vmatprep.subr.bf16.mxu0 0
    %505 = vmatpush1.bf16.msra.mxu0 %v491
    %506 = vmatprep.subr.bf16.mxu0 0
    %507 = vmatpush1.bf16.msra.mxu0 %v492
    %508 = vmatprep.subr.bf16.mxu0 0
    %509 = vmatpush1.bf16.msra.mxu0 %v493
    %510 = vmatprep.subr.bf16.mxu0 0
    %511 = vmatpush1.bf16.msra.mxu0 %v494
    %512 = vmatprep.subr.bf16.mxu0 0
    %513 = vmatpush1.bf16.msra.mxu0 %v495
    %514 = vmatprep.subr.bf16.mxu0 0
    %515 = vmatpush1.bf16.msra.mxu0 %v496
    %516 = vmatprep.subr.bf16.mxu0 0
    %517 = vmatpush1.bf16.msra.mxu0 %v497
    %518 = vmatprep.subr.bf16.mxu0 0
    %519 = vmatpush1.bf16.msra.mxu0 0
    %520 = vmatprep.subr.bf16.mxu0 0
    %521 = vmatpush1.bf16.msra.mxu0 0
    %522 = vmatprep.subr.bf16.mxu0 0
    %523 = vmatpush1.bf16.msra.mxu0 0
    %524 = vmatprep.subr.bf16.mxu0 0
    %525 = vmatpush1.bf16.msra.mxu0 0
    %526 = vmatprep.subr.bf16.mxu0 0
    %527 = vmatpush1.bf16.msra.mxu0 0
    %528 = vmatprep.subr.bf16.mxu0 0
    %529 = vmatpush1.bf16.msra.mxu0 0
    %530 = vmatprep.subr.bf16.mxu0 0
    %531 = vmatpush1.bf16.msra.mxu0 0
    %532 = vmatprep.subr.bf16.mxu0 0
    %533 = vmatpush1.bf16.msra.mxu0 0
    %534 = vmatprep.mubr.bf16.mxu0 0
    %535 = vmatmul.mubr.bf16.gmra.mrb[0].mxu0 %v498
    %v536 = vpop.f32.mrb[0].mxu0
    %v537 = vadd.f32 0.0, %v536
    %v538 = vpop.f32.mrb[0].mxu0
    %v539 = vpop.f32.mrb[0].mxu0
    %v540 = vadd.f32 0.0, %v539
    %v541 = vpop.f32.mrb[0].mxu0
    %542 = vmatprep.mubr.bf16.mxu0 0
    %543 = vmatmul.mubr.bf16.gmra.mrb[0].mxu0 %v499
    %v544 = vpop.f32.mrb[0].mxu0
    %v545 = vadd.f32 0.0, %v544
    %v546 = vpop.f32.mrb[0].mxu0
    %v547 = vpop.f32.mrb[0].mxu0
    %v548 = vadd.f32 0.0, %v547
    %v549 = vpop.f32.mrb[0].mxu0
    %550 = vmatprep.mubr.bf16.mxu0 0
    %551 = vmatmul.mubr.bf16.gmra.mrb[0].mxu0 %v500
    %v552 = vpop.f32.mrb[0].mxu0
    %v553 = vadd.f32 0.0, %v552
    %v554 = vpop.f32.mrb[0].mxu0
    %v555 = vpop.f32.mrb[0].mxu0
    %v556 = vadd.f32 0.0, %v555
    %v557 = vpop.f32.mrb[0].mxu0
    %558 = vmatprep.mubr.bf16.mxu0 0
    %559 = vmatmul.mubr.bf16.gmra.mrb[0].mxu0 %v501
    %v560 = vpop.f32.mrb[0].mxu0
    %v561 = vadd.f32 0.0, %v560
    %v562 = vpop.f32.mrb[0].mxu0
    %v563 = vpop.f32.mrb[0].mxu0
    %v564 = vadd.f32 0.0, %v563
    %v565 = vpop.f32.mrb[0].mxu0
    %566 = vdwg.mxu0
    %v567 = vpack.c.bf16 %v540, %v537
    %v568 = vpack.c.bf16 %v548, %v545
    %v569 = vpack.c.bf16 %v556, %v553
    %v570 = vpack.c.bf16 %v564, %v561
    %571 = vmatprep.subr.bf16.mxu0 0
    %572 = vmatpush1.bf16.msra.mxu0 %v567
    %573 = vmatprep.subr.bf16.mxu0 0
    %574 = vmatpush1.bf16.msra.mxu0 %v568
    %575 = vmatprep.subr.bf16.mxu0 0
    %576 = vmatpush1.bf16.msra.mxu0 %v569
    %577 = vmatprep.subr.bf16.mxu0 0
    %578 = vmatpush1.bf16.msra.mxu0 %v570
    %579 = vmatprep.subr.bf16.mxu0 0
    %580 = vmatpush1.bf16.msra.mxu0 0
    %581 = vmatprep.subr.bf16.mxu0 0
    %582 = vmatpush1.bf16.msra.mxu0 0
    %583 = vmatprep.subr.bf16.mxu0 0
    %584 = vmatpush1.bf16.msra.mxu0 0
    %585 = vmatprep.subr.bf16.mxu0 0
    %586 = vmatpush1.bf16.msra.mxu0 0
    %587 = vmatprep.subr.bf16.mxu0 0
    %588 = vmatpush1.bf16.msra.mxu0 0
    %589 = vmatprep.subr.bf16.mxu0 0
    %590 = vmatpush1.bf16.msra.mxu0 0
    %591 = vmatprep.subr.bf16.mxu0 0
    %592 = vmatpush1.bf16.msra.mxu0 0
    %593 = vmatprep.subr.bf16.mxu0 0
    %594 = vmatpush1.bf16.msra.mxu0 0
    %595 = vmatprep.subr.bf16.mxu0 0
    %596 = vmatpush1.bf16.msra.mxu0 0
    %597 = vmatprep.subr.bf16.mxu0 0
    %598 = vmatpush1.bf16.msra.mxu0 0
    %599 = vmatprep.subr.bf16.mxu0 0
    %600 = vmatpush1.bf16.msra.mxu0 0
    %601 = vmatprep.subr.bf16.mxu0 0
    %602 = vmatpush1.bf16.msra.mxu0 0
    %603 = vmatprep.mubr.bf16.mxu0 0
    %604 = vmatmul.mubr.bf16.gmra.mrb[0].mxu0 %v303
    %v605 = vpop.f32.mrb[0].mxu0
    %v606 = vadd.f32 0.0, %v605
    %v607 = vpop.f32.mrb[0].mxu0
    %v608 = vpop.f32.mrb[0].mxu0
    %v609 = vadd.f32 0.0, %v608
    %v610 = vpop.f32.mrb[0].mxu0
    %611 = vmatprep.mubr.bf16.mxu0 0
    %612 = vmatmul.mubr.bf16.gmra.mrb[0].mxu0 %v306
    %v613 = vpop.f32.mrb[0].mxu0
    %v614 = vadd.f32 0.0, %v613
    %v615 = vpop.f32.mrb[0].mxu0
    %v616 = vpop.f32.mrb[0].mxu0
    %v617 = vadd.f32 0.0, %v616
    %v618 = vpop.f32.mrb[0].mxu0
    %619 = vmatprep.mubr.bf16.mxu0 0
    %620 = vmatmul.mubr.bf16.gmra.mrb[0].mxu0 %v309
    %v621 = vpop.f32.mrb[0].mxu0
    %v622 = vadd.f32 0.0, %v621
    %v623 = vpop.f32.mrb[0].mxu0
    %v624 = vpop.f32.mrb[0].mxu0
    %v625 = vadd.f32 0.0, %v624
    %v626 = vpop.f32.mrb[0].mxu0
    %627 = vmatprep.mubr.bf16.mxu0 0
    %628 = vmatmul.mubr.bf16.gmra.mrb[0].mxu0 %v312
    %v629 = vpop.f32.mrb[0].mxu0
    %v630 = vadd.f32 0.0, %v629
    %v631 = vpop.f32.mrb[0].mxu0
    %v632 = vpop.f32.mrb[0].mxu0
    %v633 = vadd.f32 0.0, %v632
    %v634 = vpop.f32.mrb[0].mxu0
    %635 = vdwg.mxu0
    %v636 = vld [vmem:[%s6] sm:$0x1]
    %v637 = vld [vmem:[%s7] sm:$0x1]
    %v638 = vadd.f32 %v606, %v609
    %v639 = vadd.f32 %v638, %v614
    %v640 = vadd.f32 %v639, %v617
    %v641 = vadd.f32 %v640, %v622
    %v642 = vadd.f32 %v641, %v625
    %v643 = vadd.f32 %v642, %v630
    %v644 = vadd.f32 %v643, %v633
    %v645 = vrot.slane %v644, 4
    %v646 = vadd.f32 %v644, %v645
    %v647 = vrot.slane %v646, 2
    %v648 = vadd.f32 %v646, %v647
    %v649 = vrot.slane %v648, 1
    %v650 = vadd.f32 %v648, %v649
    %v651 = vmul.f32 %v606, %v606
    %v652 = vmul.f32 %v609, %v609
    %v653 = vmul.f32 %v614, %v614
    %v654 = vmul.f32 %v617, %v617
    %v655 = vmul.f32 %v622, %v622
    %v656 = vmul.f32 %v625, %v625
    %v657 = vmul.f32 %v630, %v630
    %v658 = vmul.f32 %v633, %v633
    %v659 = vadd.f32 %v651, %v652
    %v660 = vadd.f32 %v659, %v653
    %v661 = vadd.f32 %v660, %v654
    %v662 = vadd.f32 %v661, %v655
    %v663 = vadd.f32 %v662, %v656
    %v664 = vadd.f32 %v663, %v657
    %v665 = vadd.f32 %v664, %v658
    %v666 = vrot.slane %v665, 4
    %v667 = vadd.f32 %v665, %v666
    %v668 = vrot.slane %v667, 2
    %v669 = vadd.f32 %v667, %v668
    %v670 = vrot.slane %v669, 1
    %v671 = vadd.f32 %v669, %v670
    %v672 = vmul.f32 %v650, 0.015625
    %v673 = vmul.f32 %v671, 0.015625
    %v674 = vmul.f32 %v672, %v672
    %v675 = vsub.f32 %v673, %v674
    %v676 = vmax.f32 %v675, 0.0
    %v677 = vsub.f32 %v606, %v672
    %v678 = vsub.f32 %v609, %v672
    %v679 = vsub.f32 %v614, %v672
    %v680 = vsub.f32 %v617, %v672
    %v681 = vsub.f32 %v622, %v672
    %v682 = vsub.f32 %v625, %v672
    %v683 = vsub.f32 %v630, %v672
    %v684 = vsub.f32 %v633, %v672
    %v685 = vadd.f32 %v676, 1e-05
    %v686 = vrsqrt.pop %v685
    %v687 = vmul.f32 %v677, %v686
    %v688 = vmul.f32 %v678, %v686
    %v689 = vmul.f32 %v679, %v686
    %v690 = vmul.f32 %v680, %v686
    %v691 = vmul.f32 %v681, %v686
    %v692 = vmul.f32 %v682, %v686
    %v693 = vmul.f32 %v683, %v686
    %v694 = vmul.f32 %v684, %v686
    %v696 = vlaneseq
    %v697 = vshrl.u32 %v696, 7
    %v698 = vsub.s32 0, %v697
    %v699 = vrot.slane %v636, %v698
    %v701 = vmul.f32 %v687, %v699
    %v702 = vmul.f32 %v688, %v699
    %v703 = vmul.f32 %v689, %v699
    %v704 = vmul.f32 %v690, %v699
    %v705 = vmul.f32 %v691, %v699
    %v706 = vmul.f32 %v692, %v699
    %v707 = vmul.f32 %v693, %v699
    %v708 = vmul.f32 %v694, %v699
    %v710 = vlaneseq
    %v711 = vshrl.u32 %v710, 7
    %v712 = vsub.s32 0, %v711
    %v713 = vrot.slane %v637, %v712
    %v715 = vadd.f32 %v701, %v713
    %v716 = vadd.f32 %v702, %v713
    %v717 = vadd.f32 %v703, %v713
    %v718 = vadd.f32 %v704, %v713
    %v719 = vadd.f32 %v705, %v713
    %v720 = vadd.f32 %v706, %v713
    %v721 = vadd.f32 %v707, %v713
    %v722 = vadd.f32 %v708, %v713
    %v723 = vmax.f32 %v715, 0.0
    %v724 = vmax.f32 %v716, 0.0
    %v725 = vmax.f32 %v717, 0.0
    %v726 = vmax.f32 %v718, 0.0
    %v727 = vmax.f32 %v719, 0.0
    %v728 = vmax.f32 %v720, 0.0
    %v729 = vmax.f32 %v721, 0.0
    %v730 = vmax.f32 %v722, 0.0
    %v731 = vld [vmem:[#allocation10] sm:$0xff]
    %v732 = vld [vmem:[#allocation10 + $0x8] sm:$0xff]
    %v733 = vld [vmem:[#allocation10 + $0x10] sm:$0xff]
    %v734 = vld [vmem:[#allocation10 + $0x18] sm:$0xff]
    %v735 = vld [vmem:[#allocation10 + $0x20] sm:$0xff]
    %v736 = vld [vmem:[#allocation10 + $0x28] sm:$0xff]
    %v737 = vld [vmem:[#allocation10 + $0x30] sm:$0xff]
    %v738 = vld [vmem:[#allocation10 + $0x38] sm:$0xff]
    %v739 = vld [vmem:[#allocation10 + $0x40] sm:$0xff]
    %v740 = vld [vmem:[#allocation10 + $0x48] sm:$0xff]
    %v741 = vld [vmem:[#allocation10 + $0x50] sm:$0xff]
    %v742 = vld [vmem:[#allocation10 + $0x58] sm:$0xff]
    %v743 = vld [vmem:[#allocation10 + $0x60] sm:$0xff]
    %v744 = vld [vmem:[#allocation10 + $0x68] sm:$0xff]
    %v745 = vld [vmem:[#allocation10 + $0x70] sm:$0xff]
    %v746 = vld [vmem:[#allocation10 + $0x78] sm:$0xff]
    %v747 = vpack.c.bf16 %v732, %v731
    %v748 = vpack.c.bf16 %v734, %v733
    %v749 = vpack.c.bf16 %v736, %v735
    %v750 = vpack.c.bf16 %v738, %v737
    %v751 = vpack.c.bf16 %v740, %v739
    %v752 = vpack.c.bf16 %v742, %v741
    %v753 = vpack.c.bf16 %v744, %v743
    %v754 = vpack.c.bf16 %v746, %v745
    %v755 = vpack.c.bf16 %v724, %v723
    %v756 = vpack.c.bf16 %v726, %v725
    %v757 = vpack.c.bf16 %v728, %v727
    %v758 = vpack.c.bf16 %v730, %v729
    %759 = vmatprep.subr.bf16.mxu0 0
    %760 = vmatpush1.bf16.msra.mxu0 %v747
    %761 = vmatprep.subr.bf16.mxu0 0
    %762 = vmatpush1.bf16.msra.mxu0 %v748
    %763 = vmatprep.subr.bf16.mxu0 0
    %764 = vmatpush1.bf16.msra.mxu0 %v749
    %765 = vmatprep.subr.bf16.mxu0 0
    %766 = vmatpush1.bf16.msra.mxu0 %v750
    %767 = vmatprep.subr.bf16.mxu0 0
    %768 = vmatpush1.bf16.msra.mxu0 %v751
    %769 = vmatprep.subr.bf16.mxu0 0
    %770 = vmatpush1.bf16.msra.mxu0 %v752
    %771 = vmatprep.subr.bf16.mxu0 0
    %772 = vmatpush1.bf16.msra.mxu0 %v753
    %773 = vmatprep.subr.bf16.mxu0 0
    %774 = vmatpush1.bf16.msra.mxu0 %v754
    %775 = vmatprep.subr.bf16.mxu0 0
    %776 = vmatpush1.bf16.msra.mxu0 0
    %777 = vmatprep.subr.bf16.mxu0 0
    %778 = vmatpush1.bf16.msra.mxu0 0
    %779 = vmatprep.subr.bf16.mxu0 0
    %780 = vmatpush1.bf16.msra.mxu0 0
    %781 = vmatprep.subr.bf16.mxu0 0
    %782 = vmatpush1.bf16.msra.mxu0 0
    %783 = vmatprep.subr.bf16.mxu0 0
    %784 = vmatpush1.bf16.msra.mxu0 0
    %785 = vmatprep.subr.bf16.mxu0 0
    %786 = vmatpush1.bf16.msra.mxu0 0
    %787 = vmatprep.subr.bf16.mxu0 0
    %788 = vmatpush1.bf16.msra.mxu0 0
    %789 = vmatprep.subr.bf16.mxu0 0
    %790 = vmatpush1.bf16.msra.mxu0 0
    %791 = vmatprep.mubr.bf16.mxu0 0
    %792 = vmatmul.mubr.bf16.gmra.mrb[0].mxu0 %v755
    %v793 = vpop.f32.mrb[0].mxu0
    %v794 = vadd.f32 0.0, %v793
    %v795 = vpop.f32.mrb[0].mxu0
    %v796 = vpop.f32.mrb[0].mxu0
    %v797 = vadd.f32 0.0, %v796
    %v798 = vpop.f32.mrb[0].mxu0
    %799 = vmatprep.mubr.bf16.mxu0 0
    %800 = vmatmul.mubr.bf16.gmra.mrb[0].mxu0 %v756
    %v801 = vpop.f32.mrb[0].mxu0
    %v802 = vadd.f32 0.0, %v801
    %v803 = vpop.f32.mrb[0].mxu0
    %v804 = vpop.f32.mrb[0].mxu0
    %v805 = vadd.f32 0.0, %v804
    %v806 = vpop.f32.mrb[0].mxu0
    %807 = vmatprep.mubr.bf16.mxu0 0
    %808 = vmatmul.mubr.bf16.gmra.mrb[0].mxu0 %v757
    %v809 = vpop.f32.mrb[0].mxu0
    %v810 = vadd.f32 0.0, %v809
    %v811 = vpop.f32.mrb[0].mxu0
    %v812 = vpop.f32.mrb[0].mxu0
    %v813 = vadd.f32 0.0, %v812
    %v814 = vpop.f32.mrb[0].mxu0
    %815 = vmatprep.mubr.bf16.mxu0 0
    %816 = vmatmul.mubr.bf16.gmra.mrb[0].mxu0 %v758
    %v817 = vpop.f32.mrb[0].mxu0
    %v818 = vadd.f32 0.0, %v817
    %v819 = vpop.f32.mrb[0].mxu0
    %v820 = vpop.f32.mrb[0].mxu0
    %v821 = vadd.f32 0.0, %v820
    %v822 = vpop.f32.mrb[0].mxu0
    %823 = vdwg.mxu0
    %v824 = vpack.c.bf16 %v797, %v794
    %v825 = vpack.c.bf16 %v805, %v802
    %v826 = vpack.c.bf16 %v813, %v810
    %v827 = vpack.c.bf16 %v821, %v818
    %v828 = vld [vmem:[%s9] sm:$0x1]
    %v830 = vlaneseq
    %v831 = vshrl.u32 %v830, 7
    %v832 = vsub.s32 0, %v831
    %v833 = vrot.slane %v828, %v832
    %835 = vmatprep.subr.bf16.mxu0 0
    %836 = vmatpush1.bf16.msra.mxu0 %v824
    %837 = vmatprep.subr.bf16.mxu0 0
    %838 = vmatpush1.bf16.msra.mxu0 %v825
    %839 = vmatprep.subr.bf16.mxu0 0
    %840 = vmatpush1.bf16.msra.mxu0 %v826
    %841 = vmatprep.subr.bf16.mxu0 0
    %842 = vmatpush1.bf16.msra.mxu0 %v827
    %843 = vmatprep.subr.bf16.mxu0 0
    %844 = vmatpush1.bf16.msra.mxu0 0
    %845 = vmatprep.subr.bf16.mxu0 0
    %846 = vmatpush1.bf16.msra.mxu0 0
    %847 = vmatprep.subr.bf16.mxu0 0
    %848 = vmatpush1.bf16.msra.mxu0 0
    %849 = vmatprep.subr.bf16.mxu0 0
    %850 = vmatpush1.bf16.msra.mxu0 0
    %851 = vmatprep.subr.bf16.mxu0 0
    %852 = vmatpush1.bf16.msra.mxu0 0
    %853 = vmatprep.subr.bf16.mxu0 0
    %854 = vmatpush1.bf16.msra.mxu0 0
    %855 = vmatprep.subr.bf16.mxu0 0
    %856 = vmatpush1.bf16.msra.mxu0 0
    %857 = vmatprep.subr.bf16.mxu0 0
    %858 = vmatpush1.bf16.msra.mxu0 0
    %859 = vmatprep.subr.bf16.mxu0 0
    %860 = vmatpush1.bf16.msra.mxu0 0
    %861 = vmatprep.subr.bf16.mxu0 0
    %862 = vmatpush1.bf16.msra.mxu0 0
    %863 = vmatprep.subr.bf16.mxu0 0
    %864 = vmatpush1.bf16.msra.mxu0 0
    %865 = vmatprep.subr.bf16.mxu0 0
    %866 = vmatpush1.bf16.msra.mxu0 0
    %867 = vmatprep.mubr.bf16.mxu0 0
    %868 = vmatmul.mubr.bf16.gmra.mrb[0].mxu0 %v303
    %v869 = vpop.f32.mrb[0].mxu0
    %v870 = vadd.f32 %v833, %v869
    %v871 = vpop.f32.mrb[0].mxu0
    %v872 = vpop.f32.mrb[0].mxu0
    %v873 = vadd.f32 %v833, %v872
    %v874 = vpop.f32.mrb[0].mxu0
    %875 = vmatprep.mubr.bf16.mxu0 0
    %876 = vmatmul.mubr.bf16.gmra.mrb[0].mxu0 %v306
    %v877 = vpop.f32.mrb[0].mxu0
    %v878 = vadd.f32 %v833, %v877
    %v879 = vpop.f32.mrb[0].mxu0
    %v880 = vpop.f32.mrb[0].mxu0
    %v881 = vadd.f32 %v833, %v880
    %v882 = vpop.f32.mrb[0].mxu0
    %883 = vmatprep.mubr.bf16.mxu0 0
    %884 = vmatmul.mubr.bf16.gmra.mrb[0].mxu0 %v309
    %v885 = vpop.f32.mrb[0].mxu0
    %v886 = vadd.f32 %v833, %v885
    %v887 = vpop.f32.mrb[0].mxu0
    %v888 = vpop.f32.mrb[0].mxu0
    %v889 = vadd.f32 %v833, %v888
    %v890 = vpop.f32.mrb[0].mxu0
    %891 = vmatprep.mubr.bf16.mxu0 0
    %892 = vmatmul.mubr.bf16.gmra.mrb[0].mxu0 %v312
    %v893 = vpop.f32.mrb[0].mxu0
    %v894 = vadd.f32 %v833, %v893
    %v895 = vpop.f32.mrb[0].mxu0
    %v896 = vpop.f32.mrb[0].mxu0
    %v897 = vadd.f32 %v833, %v896
    %v898 = vpop.f32.mrb[0].mxu0
    %899 = vdwg.mxu0
    %900 = vst [vmem:[#allocation11] sm:$0xff] %v870
    %901 = vst [vmem:[#allocation11 + $0x8] sm:$0xff] %v873
    %902 = vst [vmem:[#allocation11 + $0x10] sm:$0xff] %v878
    %903 = vst [vmem:[#allocation11 + $0x18] sm:$0xff] %v881
    %904 = vst [vmem:[#allocation11 + $0x20] sm:$0xff] %v886
    %905 = vst [vmem:[#allocation11 + $0x28] sm:$0xff] %v889
    %906 = vst [vmem:[#allocation11 + $0x30] sm:$0xff] %v894
    %907 = vst [vmem:[#allocation11 + $0x38] sm:$0xff] %v897
    // Predicated region
    $region62: #{tpu_custom_call.1} parent=1 // pred_check
      _
    $region63: #{tpu_custom_call.1} parent=1 // pred_check_branch
      %909 = sbr.rel (0) target = $region65
    $region64: #{tpu_custom_call.1} parent=1 // pred_region
      %s911 = ssub.s32 1024, 1024
      %912 = vsyncadd [#allocation4], %s911
      %s913 = sshll.u32 [#allocation11], 4
      %s914 = int_to_ptr.vmem [resolvable:$true] %s913
      %919 = dma.vmem_to_hbm [thread:$0]  %s914, 1024, %s10, [#allocation4], 128, 128, 8
    $region65: #{tpu_custom_call.1} parent=1 // pred_fallthru
      _
    // Predicated region
    $region66: #{tpu_custom_call.1} parent=1 // pred_check
      _
    $region67: #{tpu_custom_call.1} parent=1 // pred_check_branch
      %921 = sbr.rel (0) target = $region69
    $region68: #{tpu_custom_call.1} parent=1 // pred_region
      %922 = dma.done [#allocation4], 1024
    $region69: #{tpu_custom_call.1} parent=1 // pred_fallthru
      _
    %923 = vsyncpa [#allocation3], 1
    %924 = vsyncpa [#allocation6], 1
    %925 = vsyncpa [#allocation9], 1
    %926 = vsyncpa [#allocation4], 1

</llo_original>
